<compile_context>
chip_gen: v7x
topology: tpu7x:2x2x1
jax: 0.10.0
libtpu: 0.0.40
codegen_flags: <defaults>
</compile_context>

<pallas_src>
import jax
import jax.numpy as jnp
from jax.experimental import pallas as pl
from jax.experimental.pallas import tpu as pltpu


def _round_up(a, b):
    return (a + b - 1) // b * b


def ncf_fused_kernel(u_ref, i_ref, w1u_ref, w1i_ref, b1_ref, w2_ref, out_ref):
    """Fused two-head MLP for one batch tile.

    u_ref, i_ref : [TB, K]   bf16   (user / item embeddings)
    w1u_ref      : [K, 2K]   bf16   (rows of fused W1 multiplying u)
    w1i_ref      : [K, 2K]   bf16   (rows of fused W1 multiplying i)
    b1_ref       : [1, 2K]   f32    (fused first-layer bias)
    w2_ref       : [2K, 2]   bf16   (block-diagonal second layer)
    out_ref      : [TB, 2]   f32
    """
    # First layer: z @ W1_fused == u @ W1u + i @ W1i  (no HBM concat needed).
    acc = jnp.dot(u_ref[...], w1u_ref[...], preferred_element_type=jnp.float32)
    acc = acc + jnp.dot(i_ref[...], w1i_ref[...],
                        preferred_element_type=jnp.float32)
    h = jnp.maximum(acc + b1_ref[...], 0.0)  # bias + ReLU in f32

    # Second layer: both heads in one N=2 matmul against block-diagonal W2.
    out_ref[...] = jnp.dot(h.astype(jnp.bfloat16), w2_ref[...],
                           preferred_element_type=jnp.float32)


def ncf_forward(x, params, *, block_b=512):
    """x: int32 [B, 2] (user_idx, item_idx). Returns (ctr [B,1], cvr [B,1])."""
    K = params["user_embedding"].shape[1]
    B = x.shape[0]

    # Batch tile: multiple of 16 (bf16 sublane packing), capped at block_b.
    tile_b = min(block_b, _round_up(B, 16))
    Bp = _round_up(B, tile_b)

    user_idx = x[:, 0]
    item_idx = x[:, 1]
    if Bp != B:
        pad = Bp - B
        user_idx = jnp.concatenate(
            [user_idx, jnp.zeros((pad,), user_idx.dtype)])
        item_idx = jnp.concatenate(
            [item_idx, jnp.zeros((pad,), item_idx.dtype)])

    # Embedding gathers (XLA glue); cast to bf16 for the MXU.
    u = jnp.take(params["user_embedding"], user_idx, axis=0).astype(jnp.bfloat16)
    i = jnp.take(params["item_embedding"], item_idx, axis=0).astype(jnp.bfloat16)

    # --- Pack the two heads into fused weights (tiny; pre-pack in production).
    # W1_fused: [2K_in, 2K_hidden]; columns 0..K-1 -> ctr hidden, K..2K-1 -> cvr.
    w1 = jnp.concatenate([params["ctr_w1"], params["cvr_w1"]], axis=1)
    w1u = w1[:K, :].astype(jnp.bfloat16)   # [K, 2K] rows multiplying user half
    w1i = w1[K:, :].astype(jnp.bfloat16)   # [K, 2K] rows multiplying item half
    b1 = jnp.concatenate([params["ctr_b1"], params["cvr_b1"]],
                         axis=1).astype(jnp.float32)            # [1, 2K]
    zcol = jnp.zeros((K, 1), params["ctr_w2"].dtype)
    w2 = jnp.concatenate([
        jnp.concatenate([params["ctr_w2"], zcol], axis=1),      # rows 0..K-1
        jnp.concatenate([zcol, params["cvr_w2"]], axis=1),      # rows K..2K-1
    ], axis=0).astype(jnp.bfloat16)                             # [2K, 2]

    grid = (Bp // tile_b,)
    out = pl.pallas_call(
        ncf_fused_kernel,
        out_shape=jax.ShapeDtypeStruct((Bp, 2), jnp.float32),
        grid=grid,
        in_specs=[
            pl.BlockSpec((tile_b, K), lambda b: (b, 0)),        # u  (pipelined)
            pl.BlockSpec((tile_b, K), lambda b: (b, 0)),        # i  (pipelined)
            pl.BlockSpec((K, 2 * K), lambda b: (0, 0)),         # W1u (resident)
            pl.BlockSpec((K, 2 * K), lambda b: (0, 0)),         # W1i (resident)
            pl.BlockSpec((1, 2 * K), lambda b: (0, 0)),         # b1  (resident)
            pl.BlockSpec((2 * K, 2), lambda b: (0, 0)),         # W2  (resident)
        ],
        out_specs=pl.BlockSpec((tile_b, 2), lambda b: (b, 0)),
        compiler_params=pltpu.CompilerParams(
            dimension_semantics=("parallel",)),
    )(u, i, w1u, w1i, b1, w2)

    ctr = out[:B, 0:1]
    cvr = out[:B, 1:2]
    return ctr, cvr


def init_params(key, num_users, num_items, embedding_k):
    """Deterministic synthetic init matching the nn.Module's parameter shapes.
    Linear weights stored pre-transposed as [in, out]."""
    ks = jax.random.split(key, 8)
    k = embedding_k
    scale = 0.1
    return {
        "user_embedding": scale * jax.random.normal(ks[0], (num_users, k), jnp.float32),
        "item_embedding": scale * jax.random.normal(ks[1], (num_items, k), jnp.float32),
        # ctr head: Linear(2k -> k) with bias, Linear(k -> 1, no bias)
        "ctr_w1": scale * jax.random.normal(ks[2], (2 * k, k), jnp.float32),
        "ctr_b1": scale * jax.random.normal(ks[3], (1, k), jnp.float32),
        "ctr_w2": scale * jax.random.normal(ks[4], (k, 1), jnp.float32),
        # cvr head
        "cvr_w1": scale * jax.random.normal(ks[5], (2 * k, k), jnp.float32),
        "cvr_b1": scale * jax.random.normal(ks[6], (1, k), jnp.float32),
        "cvr_w2": scale * jax.random.normal(ks[7], (k, 1), jnp.float32),
    }


def ncf_reference_f32(x, params):
    """Pure-JAX f32 reference of the PyTorch forward."""
    u = jnp.take(params["user_embedding"], x[:, 0], axis=0)
    i = jnp.take(params["item_embedding"], x[:, 1], axis=0)
    z = jnp.concatenate([u, i], axis=1)
    ctr = jnp.maximum(z @ params["ctr_w1"] + params["ctr_b1"], 0.0) @ params["ctr_w2"]
    cvr = jnp.maximum(z @ params["cvr_w1"] + params["cvr_b1"], 0.0) @ params["cvr_w2"]
    return ctr, cvr


def ncf_reference_bf16(x, params):
    """Pure-JAX reference mirroring the kernel's bf16/f32 mixed precision."""
    K = params["user_embedding"].shape[1]
    u = jnp.take(params["user_embedding"], x[:, 0], axis=0).astype(jnp.bfloat16)
    i = jnp.take(params["item_embedding"], x[:, 1], axis=0).astype(jnp.bfloat16)
    w1 = jnp.concatenate([params["ctr_w1"], params["cvr_w1"]], axis=1).astype(jnp.bfloat16)
    b1 = jnp.concatenate([params["ctr_b1"], params["cvr_b1"]], axis=1)
    acc = (jnp.dot(u, w1[:K, :], preferred_element_type=jnp.float32)
           + jnp.dot(i, w1[K:, :], preferred_element_type=jnp.float32))
    h = jnp.maximum(acc + b1, 0.0).astype(jnp.bfloat16)
    ctr = jnp.dot(h[:, :K], params["ctr_w2"].astype(jnp.bfloat16),
                  preferred_element_type=jnp.float32)
    cvr = jnp.dot(h[:, K:], params["cvr_w2"].astype(jnp.bfloat16),
                  preferred_element_type=jnp.float32)
    return ctr, cvr


if __name__ == "__main__":
    num_users = 32
    num_items = 48
    embedding_k = 32
    batch = 8

    key = jax.random.PRNGKey(0)
    pkey, xkey_u, xkey_i = jax.random.split(key, 3)

    params = init_params(pkey, num_users, num_items, embedding_k)

    user_ids = jax.random.randint(xkey_u, (batch, 1), 0, num_users, dtype=jnp.int32)
    item_ids = jax.random.randint(xkey_i, (batch, 1), 0, num_items, dtype=jnp.int32)
    x = jnp.concatenate([user_ids, item_ids], axis=1)  # [B, 2] int32

    ctr, cvr = jax.jit(ncf_forward)(x, params)
    jax.block_until_ready((ctr, cvr))

    assert ctr.shape == (batch, 1) and cvr.shape == (batch, 1)

    # Tight check vs a reference that mirrors the kernel's mixed precision.
    ctr_b, cvr_b = ncf_reference_bf16(x, params)
    assert jnp.allclose(ctr, ctr_b, atol=1e-4, rtol=1e-3)
    assert jnp.allclose(cvr, cvr_b, atol=1e-4, rtol=1e-3)

    # Looser check vs the exact f32 module semantics (bf16 MXU inputs).
    ctr_f, cvr_f = ncf_reference_f32(x, params)
    assert jnp.allclose(ctr, ctr_f, atol=5e-3, rtol=5e-2)
    assert jnp.allclose(cvr, cvr_f, atol=5e-3, rtol=5e-2)

    print("KERNEL_OK")
</pallas_src>

<mosaic_0001>
module attributes {stable_mosaic.version = 11 : i64} {
  func.func @ncf_fused_kernel(%arg0: i32, %arg1: memref<16x32xbf16, #tpu.memory_space<vmem>>, %arg2: memref<16x32xbf16, #tpu.memory_space<vmem>>, %arg3: memref<32x64xbf16, #tpu.memory_space<vmem>>, %arg4: memref<32x64xbf16, #tpu.memory_space<vmem>>, %arg5: memref<1x64xf32, #tpu.memory_space<vmem>>, %arg6: memref<64x2xbf16, #tpu.memory_space<vmem>>, %arg7: memref<16x2xf32, #tpu.memory_space<vmem>>) attributes {dimension_semantics = [#tpu.dimension_semantics<parallel>], iteration_bounds = array<i64: 1>, scalar_prefetch = 0 : i64, scratch_operands = 0 : i64, tpu.core_type = #tpu.core_type<tc>, window_params = [{transform_indices = @transform_0, window_bounds = array<i64: 16, 32>}, {transform_indices = @transform_1, window_bounds = array<i64: 16, 32>}, {pipeline_mode = #tpu.pipeline_mode<synchronous>, transform_indices = @transform_2, window_bounds = array<i64: 32, 64>}, {pipeline_mode = #tpu.pipeline_mode<synchronous>, transform_indices = @transform_3, window_bounds = array<i64: 32, 64>}, {pipeline_mode = #tpu.pipeline_mode<synchronous>, transform_indices = @transform_4, window_bounds = array<i64: 1, 64>}, {pipeline_mode = #tpu.pipeline_mode<synchronous>, transform_indices = @transform_5, window_bounds = array<i64: 64, 2>}, {transform_indices = @transform_6, window_bounds = array<i64: 16, 2>}]} {
    %c0 = arith.constant 0 : index
    %c0_0 = arith.constant 0 : index
    %0 = vector.load %arg1[%c0, %c0_0] : memref<16x32xbf16, #tpu.memory_space<vmem>>, vector<16x32xbf16>
    %c0_1 = arith.constant 0 : index
    %c0_2 = arith.constant 0 : index
    %1 = vector.load %arg3[%c0_1, %c0_2] : memref<32x64xbf16, #tpu.memory_space<vmem>>, vector<32x64xbf16>
    %cst = arith.constant dense<0.000000e+00> : vector<16x64xf32>
    %2 = tpu.matmul %0, %1, %cst {dimension_numbers = #tpu.dot_dimension_numbers<[1], [0], [0], [1], [0, 0, 1, 1], [], []>} : vector<16x32xbf16>, vector<32x64xbf16>, vector<16x64xf32> -> vector<16x64xf32>
    %c0_3 = arith.constant 0 : index
    %c0_4 = arith.constant 0 : index
    %3 = vector.load %arg2[%c0_3, %c0_4] : memref<16x32xbf16, #tpu.memory_space<vmem>>, vector<16x32xbf16>
    %c0_5 = arith.constant 0 : index
    %c0_6 = arith.constant 0 : index
    %4 = vector.load %arg4[%c0_5, %c0_6] : memref<32x64xbf16, #tpu.memory_space<vmem>>, vector<32x64xbf16>
    %cst_7 = arith.constant dense<0.000000e+00> : vector<16x64xf32>
    %5 = tpu.matmul %3, %4, %cst_7 {dimension_numbers = #tpu.dot_dimension_numbers<[1], [0], [0], [1], [0, 0, 1, 1], [], []>} : vector<16x32xbf16>, vector<32x64xbf16>, vector<16x64xf32> -> vector<16x64xf32>
    %6 = arith.addf %2, %5 : vector<16x64xf32>
    %c0_8 = arith.constant 0 : index
    %c0_9 = arith.constant 0 : index
    %7 = vector.load %arg5[%c0_8, %c0_9] : memref<1x64xf32, #tpu.memory_space<vmem>>, vector<1x64xf32>
    %8 = vector.broadcast %7 : vector<1x64xf32> to vector<16x64xf32>
    %9 = arith.addf %6, %8 : vector<16x64xf32>
    %cst_10 = arith.constant 0.000000e+00 : f32
    %10 = vector.broadcast %cst_10 : f32 to vector<16x64xf32>
    %11 = arith.maximumf %9, %10 : vector<16x64xf32>
    %12 = arith.truncf %11 : vector<16x64xf32> to vector<16x64xbf16>
    %c0_11 = arith.constant 0 : index
    %c0_12 = arith.constant 0 : index
    %13 = vector.load %arg6[%c0_11, %c0_12] : memref<64x2xbf16, #tpu.memory_space<vmem>>, vector<64x2xbf16>
    %cst_13 = arith.constant dense<0.000000e+00> : vector<16x2xf32>
    %14 = tpu.matmul %12, %13, %cst_13 {dimension_numbers = #tpu.dot_dimension_numbers<[1], [0], [0], [1], [0, 0, 1, 1], [], []>} : vector<16x64xbf16>, vector<64x2xbf16>, vector<16x2xf32> -> vector<16x2xf32>
    %c0_14 = arith.constant 0 : index
    %c0_15 = arith.constant 0 : index
    %15 = vector.load %arg7[%c0_14, %c0_15] : memref<16x2xf32, #tpu.memory_space<vmem>>, vector<16x2xf32>
    tpu.vector_store %arg7[%c0_14, %c0_15], %14 {strides = array<i32>} : memref<16x2xf32, #tpu.memory_space<vmem>>, vector<16x2xf32>,
    return
  }
  func.func @transform_0(%arg0: i32) -> (i32, i32) {
    %c0_i32 = arith.constant 0 : i32
    %c0_i32_0 = arith.constant 0 : i32
    return %arg0, %c0_i32 : i32, i32
  }
  func.func @transform_1(%arg0: i32) -> (i32, i32) {
    %c0_i32 = arith.constant 0 : i32
    %c0_i32_0 = arith.constant 0 : i32
    return %arg0, %c0_i32 : i32, i32
  }
  func.func @transform_2(%arg0: i32) -> (i32, i32) {
    %c0_i32 = arith.constant 0 : i32
    %c0_i32_0 = arith.constant 0 : i32
    %c0_i32_1 = arith.constant 0 : i32
    return %c0_i32, %c0_i32_0 : i32, i32
  }
  func.func @transform_3(%arg0: i32) -> (i32, i32) {
    %c0_i32 = arith.constant 0 : i32
    %c0_i32_0 = arith.constant 0 : i32
    %c0_i32_1 = arith.constant 0 : i32
    return %c0_i32, %c0_i32_0 : i32, i32
  }
  func.func @transform_4(%arg0: i32) -> (i32, i32) {
    %c0_i32 = arith.constant 0 : i32
    %c0_i32_0 = arith.constant 0 : i32
    %c0_i32_1 = arith.constant 0 : i32
    return %c0_i32, %c0_i32_0 : i32, i32
  }
  func.func @transform_5(%arg0: i32) -> (i32, i32) {
    %c0_i32 = arith.constant 0 : i32
    %c0_i32_0 = arith.constant 0 : i32
    %c0_i32_1 = arith.constant 0 : i32
    return %c0_i32, %c0_i32_0 : i32, i32
  }
  func.func @transform_6(%arg0: i32) -> (i32, i32) {
    %c0_i32 = arith.constant 0 : i32
    %c0_i32_0 = arith.constant 0 : i32
    return %arg0, %c0_i32 : i32, i32
  }
}

</mosaic_0001>

<llo_original>
// kernel: ncf_forward.1
$region0: #{ncf_forward.1}
  #allocation0 [shape = 'u32[]', space=smem, size = 0x4, offset = 0x4, fixed_abs, tag = 'smem constant byte address 0x4 - core index']
  #allocation1 [shape = 'u32[144,128]{1,0:T(1,128)}', space=vmem, size = 0x12000, scoped, tag = 'internal scratch']
  %s0 = inlined_call_operand.vmem [shape: bf16[16,32], index: 0, kind: input, shape index: {}]
  %s1 = inlined_call_operand.vmem [shape: bf16[16,32], index: 1, kind: input, shape index: {}]
  %s2 = inlined_call_operand.vmem [shape: bf16[32,64], index: 2, kind: input, shape index: {}]
  %s3 = inlined_call_operand.vmem [shape: bf16[32,64], index: 3, kind: input, shape index: {}]
  %s4 = inlined_call_operand.vmem [shape: f32[1,64], index: 4, kind: input, shape index: {}]
  %s5 = inlined_call_operand.vmem [shape: bf16[64,2], index: 5, kind: input, shape index: {}]
  %s6 = inlined_call_operand.vmem [shape: f32[16,2], index: 6, kind: output, shape index: {}]
  %s7 = sld [smem:[#allocation0]]
  $region34: #{ncf_forward.1} parent=0
    _
  %s9 = ssub.s32 1, %s7
  %s10 = scalar_select 0, %s9, %s7
  // Predicated region
  $region2: #{ncf_forward.1} parent=0 // pred_check
    _
  $region3: #{ncf_forward.1} parent=0 // pred_check_branch
    %12 = sbr.rel (0) target = $region5
  $region4: #{ncf_forward.1} parent=0 // pred_region
    _
  $region5: #{ncf_forward.1} parent=0 // pred_fallthru
    _
  // Predicated region
  $region6: #{ncf_forward.1} parent=0 // pred_check
    _
  $region7: #{ncf_forward.1} parent=0 // pred_check_branch
    %14 = sbr.rel (0) target = $region9
  $region8: #{ncf_forward.1} parent=0 // pred_region
    _
  $region9: #{ncf_forward.1} parent=0 // pred_fallthru
    _
  // Predicated region
  $region10: #{ncf_forward.1} parent=0 // pred_check
    _
  $region11: #{ncf_forward.1} parent=0 // pred_check_branch
    %16 = sbr.rel (0) target = $region13
  $region12: #{ncf_forward.1} parent=0 // pred_region
    _
  $region13: #{ncf_forward.1} parent=0 // pred_fallthru
    _
  // Predicated region
  $region14: #{ncf_forward.1} parent=0 // pred_check
    _
  $region15: #{ncf_forward.1} parent=0 // pred_check_branch
    %18 = sbr.rel (0) target = $region17
  $region16: #{ncf_forward.1} parent=0 // pred_region
    _
  $region17: #{ncf_forward.1} parent=0 // pred_fallthru
    _
  // Predicated region
  $region18: #{ncf_forward.1} parent=0 // pred_check
    _
  $region19: #{ncf_forward.1} parent=0 // pred_check_branch
    %20 = sbr.rel (0) target = $region21
  $region20: #{ncf_forward.1} parent=0 // pred_region
    _
  $region21: #{ncf_forward.1} parent=0 // pred_fallthru
    _
  // Predicated region
  $region22: #{ncf_forward.1} parent=0 // pred_check
    _
  $region23: #{ncf_forward.1} parent=0 // pred_check_branch
    %22 = sbr.rel (0) target = $region25
  $region24: #{ncf_forward.1} parent=0 // pred_region
    _
  $region25: #{ncf_forward.1} parent=0 // pred_fallthru
    _
  %v24 = vld [vmem:[%s0] sm:$0xf]
  %v25 = vld [vmem:[%s0 + $0x4] sm:$0xf]
  %v26 = vld [vmem:[%s2] sm:$0xf]
  %v27 = vld [vmem:[%s2 + $0x4] sm:$0xf]
  %v28 = vld [vmem:[%s2 + $0x8] sm:$0xf]
  %v29 = vld [vmem:[%s2 + $0xc] sm:$0xf]
  %v30 = vld [vmem:[%s1] sm:$0xf]
  %v31 = vld [vmem:[%s1 + $0x4] sm:$0xf]
  %v32 = vld [vmem:[%s3] sm:$0xf]
  %v33 = vld [vmem:[%s3 + $0x4] sm:$0xf]
  %v34 = vld [vmem:[%s3 + $0x8] sm:$0xf]
  %v35 = vld [vmem:[%s3 + $0xc] sm:$0xf]
  %v38 = vunpack.c.l.b16 %v30
  %v39 = vunpack.c.l.b16 %v31
  %v40 = vpack.c.b16 %v39, %v38
  %v45 = vunpack.c.l.b16 %v32
  %v46 = vunpack.c.l.b16 %v33
  %v47 = vunpack.c.l.b16 %v34
  %v48 = vunpack.c.l.b16 %v35
  %v49 = vpack.c.b16 %v46, %v45
  %v50 = vpack.c.b16 %v48, %v47
  %vm53 = vcmask 261120
  %v55 = vsel %vm53, %v40, 0
  %57 = vmatprep.subr.bf16.mxu0 0
  %58 = vmatpush1.bf16.msra.mxu0 %v49
  %59 = vmatprep.subr.bf16.mxu0 0
  %60 = vmatpush1.bf16.msra.mxu0 %v50
  %61 = vmatprep.subr.bf16.mxu0 0
  %62 = vmatpush1.bf16.msra.mxu0 0
  %63 = vmatprep.subr.bf16.mxu0 0
  %64 = vmatpush1.bf16.msra.mxu0 0
  %65 = vmatprep.subr.bf16.mxu0 0
  %66 = vmatpush1.bf16.msra.mxu0 0
  %67 = vmatprep.subr.bf16.mxu0 0
  %68 = vmatpush1.bf16.msra.mxu0 0
  %69 = vmatprep.subr.bf16.mxu0 0
  %70 = vmatpush1.bf16.msra.mxu0 0
  %71 = vmatprep.subr.bf16.mxu0 0
  %72 = vmatpush1.bf16.msra.mxu0 0
  %73 = vmatprep.subr.bf16.mxu0 0
  %74 = vmatpush1.bf16.msra.mxu0 0
  %75 = vmatprep.subr.bf16.mxu0 0
  %76 = vmatpush1.bf16.msra.mxu0 0
  %77 = vmatprep.subr.bf16.mxu0 0
  %78 = vmatpush1.bf16.msra.mxu0 0
  %79 = vmatprep.subr.bf16.mxu0 0
  %80 = vmatpush1.bf16.msra.mxu0 0
  %81 = vmatprep.subr.bf16.mxu0 0
  %82 = vmatpush1.bf16.msra.mxu0 0
  %83 = vmatprep.subr.bf16.mxu0 0
  %84 = vmatpush1.bf16.msra.mxu0 0
  %85 = vmatprep.subr.bf16.mxu0 0
  %86 = vmatpush1.bf16.msra.mxu0 0
  %87 = vmatprep.subr.bf16.mxu0 0
  %88 = vmatpush1.bf16.msra.mxu0 0
  %89 = vmatprep.mubr.bf16.mxu0 0
  %90 = vmatmul.mubr.bf16.gmra.mrb[0].mxu0 %v55
  %v91 = vpop.f32.mrb[0].mxu0
  %v92 = vadd.f32 0.0, %v91
  %v93 = vpop.f32.mrb[0].mxu0
  %v94 = vpop.f32.mrb[0].mxu0
  %v95 = vadd.f32 0.0, %v94
  %v96 = vpop.f32.mrb[0].mxu0
  %97 = vdwg.mxu0
  %v100 = vunpack.c.l.b16 %v24
  %v101 = vunpack.c.l.b16 %v25
  %v102 = vpack.c.b16 %v101, %v100
  %v107 = vunpack.c.l.b16 %v26
  %v108 = vunpack.c.l.b16 %v27
  %v109 = vunpack.c.l.b16 %v28
  %v110 = vunpack.c.l.b16 %v29
  %v111 = vpack.c.b16 %v108, %v107
  %v112 = vpack.c.b16 %v110, %v109
  %v116 = vsel %vm53, %v102, 0
  %118 = vmatprep.subr.bf16.mxu0 0
  %119 = vmatpush1.bf16.msra.mxu0 %v111
  %120 = vmatprep.subr.bf16.mxu0 0
  %121 = vmatpush1.bf16.msra.mxu0 %v112
  %122 = vmatprep.subr.bf16.mxu0 0
  %123 = vmatpush1.bf16.msra.mxu0 0
  %124 = vmatprep.subr.bf16.mxu0 0
  %125 = vmatpush1.bf16.msra.mxu0 0
  %126 = vmatprep.subr.bf16.mxu0 0
  %127 = vmatpush1.bf16.msra.mxu0 0
  %128 = vmatprep.subr.bf16.mxu0 0
  %129 = vmatpush1.bf16.msra.mxu0 0
  %130 = vmatprep.subr.bf16.mxu0 0
  %131 = vmatpush1.bf16.msra.mxu0 0
  %132 = vmatprep.subr.bf16.mxu0 0
  %133 = vmatpush1.bf16.msra.mxu0 0
  %134 = vmatprep.subr.bf16.mxu0 0
  %135 = vmatpush1.bf16.msra.mxu0 0
  %136 = vmatprep.subr.bf16.mxu0 0
  %137 = vmatpush1.bf16.msra.mxu0 0
  %138 = vmatprep.subr.bf16.mxu0 0
  %139 = vmatpush1.bf16.msra.mxu0 0
  %140 = vmatprep.subr.bf16.mxu0 0
  %141 = vmatpush1.bf16.msra.mxu0 0
  %142 = vmatprep.subr.bf16.mxu0 0
  %143 = vmatpush1.bf16.msra.mxu0 0
  %144 = vmatprep.subr.bf16.mxu0 0
  %145 = vmatpush1.bf16.msra.mxu0 0
  %146 = vmatprep.subr.bf16.mxu0 0
  %147 = vmatpush1.bf16.msra.mxu0 0
  %148 = vmatprep.subr.bf16.mxu0 0
  %149 = vmatpush1.bf16.msra.mxu0 0
  %150 = vmatprep.mubr.bf16.mxu0 0
  %151 = vmatmul.mubr.bf16.gmra.mrb[0].mxu0 %v116
  %v152 = vpop.f32.mrb[0].mxu0
  %v153 = vadd.f32 %v92, %v152
  %v154 = vpop.f32.mrb[0].mxu0
  %v155 = vpop.f32.mrb[0].mxu0
  %v156 = vadd.f32 %v95, %v155
  %v157 = vpop.f32.mrb[0].mxu0
  %158 = vdwg.mxu0
  %v159 = vld [vmem:[%s4] sm:$0x1]
  %v161 = vlaneseq
  %v162 = vshrl.u32 %v161, 7
  %v163 = vsub.s32 0, %v162
  %v164 = vrot.slane %v159, %v163
  %v166 = vadd.f32 %v153, %v164
  %v167 = vadd.f32 %v156, %v164
  %v168 = vmax.f32 %v166, 0.0
  %v169 = vmax.f32 %v167, 0.0
  %v170 = vpack.c.bf16 %v169, %v168
  %v171 = vld [vmem:[%s5] sm:$0xf]
  %v172 = vld [vmem:[%s5 + $0x4] sm:$0xf]
  %v173 = vld [vmem:[%s5 + $0x8] sm:$0xf]
  %v174 = vld [vmem:[%s5 + $0xc] sm:$0xf]
  %v175 = vld [vmem:[%s5 + $0x10] sm:$0xf]
  %v176 = vld [vmem:[%s5 + $0x14] sm:$0xf]
  %v177 = vld [vmem:[%s5 + $0x18] sm:$0xf]
  %v178 = vld [vmem:[%s5 + $0x1c] sm:$0xf]
  %v187 = vunpack.c.l.b16 %v171
  %v188 = vunpack.c.l.b16 %v172
  %v189 = vunpack.c.l.b16 %v173
  %v190 = vunpack.c.l.b16 %v174
  %v191 = vunpack.c.l.b16 %v175
  %v192 = vunpack.c.l.b16 %v176
  %v193 = vunpack.c.l.b16 %v177
  %v194 = vunpack.c.l.b16 %v178
  %v195 = vpack.c.b16 %v188, %v187
  %v196 = vpack.c.b16 %v190, %v189
  %v197 = vpack.c.b16 %v192, %v191
  %v198 = vpack.c.b16 %v194, %v193
  %vm203 = vcmask 523264
  %v205 = vsel %vm203, %v170, 0
  %207 = vmatprep.subr.bf16.mxu0 0
  %208 = vmatpush1.bf16.msra.mxu0 %v195
  %209 = vmatprep.subr.bf16.mxu0 0
  %210 = vmatpush1.bf16.msra.mxu0 %v196
  %211 = vmatprep.subr.bf16.mxu0 0
  %212 = vmatpush1.bf16.msra.mxu0 %v197
  %213 = vmatprep.subr.bf16.mxu0 0
  %214 = vmatpush1.bf16.msra.mxu0 %v198
  %215 = vmatprep.subr.bf16.mxu0 0
  %216 = vmatpush1.bf16.msra.mxu0 0
  %217 = vmatprep.subr.bf16.mxu0 0
  %218 = vmatpush1.bf16.msra.mxu0 0
  %219 = vmatprep.subr.bf16.mxu0 0
  %220 = vmatpush1.bf16.msra.mxu0 0
  %221 = vmatprep.subr.bf16.mxu0 0
  %222 = vmatpush1.bf16.msra.mxu0 0
  %223 = vmatprep.subr.bf16.mxu0 0
  %224 = vmatpush1.bf16.msra.mxu0 0
  %225 = vmatprep.subr.bf16.mxu0 0
  %226 = vmatpush1.bf16.msra.mxu0 0
  %227 = vmatprep.subr.bf16.mxu0 0
  %228 = vmatpush1.bf16.msra.mxu0 0
  %229 = vmatprep.subr.bf16.mxu0 0
  %230 = vmatpush1.bf16.msra.mxu0 0
  %231 = vmatprep.subr.bf16.mxu0 0
  %232 = vmatpush1.bf16.msra.mxu0 0
  %233 = vmatprep.subr.bf16.mxu0 0
  %234 = vmatpush1.bf16.msra.mxu0 0
  %235 = vmatprep.subr.bf16.mxu0 0
  %236 = vmatpush1.bf16.msra.mxu0 0
  %237 = vmatprep.subr.bf16.mxu0 0
  %238 = vmatpush1.bf16.msra.mxu0 0
  %239 = vmatprep.mubr.bf16.mxu0 0
  %240 = vmatmul.mubr.bf16.gmra.mrb[0].mxu0 %v205
  %v241 = vpop.f32.mrb[0].mxu0
  %v242 = vadd.f32 0.0, %v241
  %v243 = vpop.f32.mrb[0].mxu0
  %v244 = vpop.f32.mrb[0].mxu0
  %v245 = vadd.f32 0.0, %v244
  %v246 = vpop.f32.mrb[0].mxu0
  %247 = vdwg.mxu0
  %vm248 = vcmask 15360
  %249 = vst.msk [vmem:[%s6] sm:$0xff] %vm248, %v242
  %250 = vst.msk [vmem:[%s6 + $0x8] sm:$0xff] %vm248, %v245
  // Predicated region
  $region26: #{ncf_forward.1} parent=0 // pred_check
    _
  $region27: #{ncf_forward.1} parent=0 // pred_check_branch
    %252 = sbr.rel (0) target = $region29
  $region28: #{ncf_forward.1} parent=0 // pred_region
    _
  $region29: #{ncf_forward.1} parent=0 // pred_fallthru
    _
  // Predicated region
  $region30: #{ncf_forward.1} parent=0 // pred_check
    _
  $region31: #{ncf_forward.1} parent=0 // pred_check_branch
    %254 = sbr.rel (0) target = $region33
  $region32: #{ncf_forward.1} parent=0 // pred_region
    _
  $region33: #{ncf_forward.1} parent=0 // pred_fallthru
    _

</llo_original>
